<compile_context>
chip_gen: v6e
topology: v6e:2x2x1
jax: 0.10.0
libtpu: 0.0.40
codegen_flags: <defaults>
</compile_context>

<pallas_src>
import functools
import math

import jax
import jax.numpy as jnp
from jax.experimental import pallas as pl
from jax.experimental.pallas import tpu as pltpu

EPS = 1e-6


def _pow_static(x, p):
    """x ** p for x > 0 with a static Python exponent, minimizing EUP ops."""
    ip = int(math.floor(p))
    frac = p - ip
    # integer part: repeated squaring -> VPU multiplies only
    out = None
    base = x
    e = ip
    while e > 0:
        if e & 1:
            out = base if out is None else out * base
        e >>= 1
        if e:
            base = base * base
    if out is None:
        out = jnp.ones_like(x)
    if abs(frac - 0.5) < 1e-12:
        out = out * jnp.sqrt(x)                      # single EUP op
    elif frac > 1e-12:
        out = out * jnp.exp(frac * jnp.log(x))       # general fallback
    return out


def _gem_kernel_static(p, inv_p, precision, x_ref, pool_ref, o_ref):
    """Static (compile-time) exponent path.
       x_ref:    VMEM (Tr, hw)
       pool_ref: VMEM (hw, Bt)   block-pooling matrix, entries 1/k_b
       o_ref:    VMEM (Tr, Bt)
    """
    x = jnp.maximum(x_ref[...].astype(jnp.float32), EPS)        # (Tr, hw)
    xp = _pow_static(x, p)                                      # (Tr, hw)
    m = jnp.dot(xp, pool_ref[...],                              # (Tr, Bt) on MXU
                preferred_element_type=jnp.float32,
                precision=precision)
    # guard against subnormal flush (all-eps bin): keep m > 0 so the result is
    # ~eps instead of exp(log(0)) = 0
    m = jnp.maximum(m, jnp.finfo(jnp.float32).tiny)
    o_ref[...] = jnp.exp(jnp.log(m) * inv_p).astype(o_ref.dtype)


def _gem_kernel_traced(precision, s_ref, x_ref, pool_ref, o_ref):
    """Traced (learnable) exponent path. s_ref: SMEM (2,) = [p, 1/p]."""
    p = s_ref[0]
    inv_p = s_ref[1]
    x = jnp.maximum(x_ref[...].astype(jnp.float32), EPS)
    xp = jnp.exp(p * jnp.log(x))
    m = jnp.dot(xp, pool_ref[...],
                preferred_element_type=jnp.float32,
                precision=precision)
    m = jnp.maximum(m, jnp.finfo(jnp.float32).tiny)
    o_ref[...] = jnp.exp(jnp.log(m) * inv_p).astype(o_ref.dtype)


def _pool_matrix(hw, bin_num, dtype=jnp.float32):
    """[hw, sum(bin_num)]; column j of bin b averages rows j*k .. (j+1)*k-1."""
    rows = jnp.arange(hw)[:, None]
    cols = []
    for b in bin_num:
        k = hw // b
        cols.append((rows // k == jnp.arange(b)[None, :]).astype(dtype) * (1.0 / k))
    return jnp.concatenate(cols, axis=1)


def _pick_row_tile(rows, hw, itemsize):
    """Row tile over the flattened (n*c) axis.

    Target: ~2 MiB per x block (measured sweet spot for HBM streaming); keep
    >= 4 grid steps when there are enough rows so v7x's two TensorCores both
    get work; multiple of 8; prefer a tile that divides `rows` (avoids
    undefined data in padded rows of the last block)."""
    if rows <= 8:
        return rows
    target_block_bytes = 2 * 1024 * 1024
    tr = target_block_bytes // (hw * itemsize)
    tr = max(8, min(rows, int(tr)))
    if rows >= 4 * 8:
        tr = min(tr, max(8, rows // 4))           # keep the grid >= 4 steps
    tr = max(8, (tr // 8) * 8)
    if rows % tr != 0:
        # look for a nearby divisor of rows (bounded search; keep tile large)
        for cand in range(tr, max(8, tr - 256) - 1, -8):
            if cand >= 8 and rows % cand == 0:
                tr = cand
                break
    return tr


def _pool_precision():
    """HIGHEST on v6e/v7x (matmul fully hidden under HBM); HIGH on v5-class
    chips where the 6-pass f32 matmul on a half-filled MXU becomes critical."""
    try:
        kind = jax.devices()[0].device_kind.lower()
    except Exception:
        kind = ""
    if "v5" in kind or "v4" in kind:
        return jax.lax.Precision.HIGH
    return jax.lax.Precision.HIGHEST


def gem_hpp(x, p, bin_num=(64,)):
    """x: [n, c, h, w]; p: Python number (static) or scalar array (learnable).
    Returns [n, c, sum(bin_num)]."""
    n, c, h, w = x.shape
    hw = h * w
    for b in bin_num:
        assert hw % b == 0, "h*w must be divisible by each bin"
    bt = int(sum(bin_num))
    rows = n * c

    x_flat = x.reshape(rows, hw)             # free reshape, no transpose
    pool = _pool_matrix(hw, bin_num)         # [hw, bt], f32, tiny
    tr = _pick_row_tile(rows, hw, x.dtype.itemsize)
    grid = (pl.cdiv(rows, tr),)
    precision = _pool_precision()

    static_p = isinstance(p, (int, float))

    if static_p:
        kernel = functools.partial(
            _gem_kernel_static, float(p), 1.0 / float(p), precision)
        grid_spec = pltpu.PrefetchScalarGridSpec(
            num_scalar_prefetch=0,
            grid=grid,
            in_specs=[
                pl.BlockSpec((tr, hw), lambda i: (i, 0)),
                pl.BlockSpec((hw, bt), lambda i: (0, 0)),
            ],
            out_specs=pl.BlockSpec((tr, bt), lambda i: (i, 0)),
        )
        args = (x_flat, pool)
    else:
        # TODO(synk): if the learnable p is frozen at eval time, pass it as a
        # Python float to get the cheaper repeated-squaring (1 EUP op/elem) path.
        p_scalar = jnp.asarray(p, jnp.float32).reshape(())
        s = jnp.stack([p_scalar, 1.0 / p_scalar])   # (2,) -> SMEM scalar prefetch
        kernel = functools.partial(_gem_kernel_traced, precision)
        grid_spec = pltpu.PrefetchScalarGridSpec(
            num_scalar_prefetch=1,
            grid=grid,
            in_specs=[
                pl.BlockSpec((tr, hw), lambda i, s_ref: (i, 0)),
                pl.BlockSpec((hw, bt), lambda i, s_ref: (0, 0)),
            ],
            out_specs=pl.BlockSpec((tr, bt), lambda i, s_ref: (i, 0)),
        )
        args = (s, x_flat, pool)

    out_flat = pl.pallas_call(
        kernel,
        out_shape=jax.ShapeDtypeStruct((rows, bt), x.dtype),
        grid_spec=grid_spec,
        compiler_params=pltpu.CompilerParams(
            dimension_semantics=("parallel",)),
    )(*args)
    return out_flat.reshape(n, c, bt)


def _reference(x, p, bin_num):
    n, c, h, w = x.shape
    outs = []
    for b in bin_num:
        z = x.reshape(n, c, b, -1)
        z = jnp.maximum(z, EPS) ** p
        z = jnp.mean(z, axis=-1) ** (1.0 / p)
        outs.append(z)
    return jnp.concatenate(outs, axis=-1)


if __name__ == "__main__":
    key = jax.random.PRNGKey(0)
    n, c, h, w = 2, 4, 16, 16
    p_init = 6.5                            # module default (nn.Parameter init)
    x = jax.random.uniform(key, (n, c, h, w), dtype=jnp.float32)

    # 1) module default: bin_num=[64], static p (repeated-squaring fast path)
    bin_num = (64,)
    out = jax.block_until_ready(gem_hpp(x, p_init, bin_num=bin_num))
    ref = _reference(x, p_init, bin_num)
    assert out.shape == (n, c, sum(bin_num)), out.shape
    assert jnp.allclose(out, ref, rtol=1e-4, atol=1e-5), "static-p mismatch"

    # 2) learnable p (traced scalar, like the nn.Parameter) -> exp/log path
    p_param = jnp.ones((1,), jnp.float32) * p_init
    out_t = jax.block_until_ready(gem_hpp(x, p_param, bin_num=bin_num))
    assert jnp.allclose(out_t, ref, rtol=1e-4, atol=1e-5), "traced-p mismatch"

    # 3) multi-bin pyramid fused into a single pass over x
    bins = (16, 32, 64)
    out_p = jax.block_until_ready(gem_hpp(x, p_init, bin_num=bins))
    ref_p = _reference(x, p_init, bins)
    assert out_p.shape == (n, c, sum(bins)), out_p.shape
    assert jnp.allclose(out_p, ref_p, rtol=1e-4, atol=1e-5), "multi-bin mismatch"

    # 4) larger shape: exercises the big (~2 MiB) row tiles and multi-step grid
    n2, c2 = 8, 256                          # rows = 2048 -> 4+ grid steps
    x2 = jax.random.uniform(jax.random.PRNGKey(1), (n2, c2, h, w), jnp.float32)
    out2 = jax.block_until_ready(gem_hpp(x2, p_init, bin_num=bin_num))
    ref2 = _reference(x2, p_init, bin_num)
    assert jnp.allclose(out2, ref2, rtol=1e-4, atol=1e-5), "large-shape mismatch"

    print("KERNEL_OK")
</pallas_src>

<mosaic_0001>
module attributes {stable_mosaic.version = 11 : i64} {
  func.func @_gem_kernel_static(%arg0: i32, %arg1: memref<8x256xf32, #tpu.memory_space<vmem>>, %arg2: memref<256x64xf32, #tpu.memory_space<vmem>>, %arg3: memref<8x64xf32, #tpu.memory_space<vmem>>) attributes {dimension_semantics = [#tpu.dimension_semantics<parallel>], iteration_bounds = array<i64: 1>, scalar_prefetch = 0 : i64, scratch_operands = 0 : i64, tpu.core_type = #tpu.core_type<tc>, window_params = [{transform_indices = @transform_0, window_bounds = array<i64: 8, 256>}, {pipeline_mode = #tpu.pipeline_mode<synchronous>, transform_indices = @transform_1, window_bounds = array<i64: 256, 64>}, {transform_indices = @transform_2, window_bounds = array<i64: 8, 64>}]} {
    %c0 = arith.constant 0 : index
    %c0_0 = arith.constant 0 : index
    %0 = vector.load %arg1[%c0, %c0_0] : memref<8x256xf32, #tpu.memory_space<vmem>>, vector<8x256xf32>
    %cst = arith.constant 9.99999997E-7 : f32
    %1 = vector.broadcast %cst : f32 to vector<8x256xf32>
    %2 = arith.maximumf %0, %1 : vector<8x256xf32>
    %3 = arith.mulf %2, %2 : vector<8x256xf32>
    %4 = arith.mulf %3, %3 : vector<8x256xf32>
    %5 = arith.mulf %3, %4 : vector<8x256xf32>
    %6 = math.sqrt %2 : vector<8x256xf32>
    %7 = arith.mulf %5, %6 : vector<8x256xf32>
    %c0_1 = arith.constant 0 : index
    %c0_2 = arith.constant 0 : index
    %8 = vector.load %arg2[%c0_1, %c0_2] : memref<256x64xf32, #tpu.memory_space<vmem>>, vector<256x64xf32>
    %cst_3 = arith.constant dense<0.000000e+00> : vector<8x64xf32>
    %9 = tpu.matmul %7, %8, %cst_3 {dimension_numbers = #tpu.dot_dimension_numbers<[1], [0], [0], [1], [0, 0, 1, 1], [], []>, precision = #tpu.contract_precision<fp32>} : vector<8x256xf32>, vector<256x64xf32>, vector<8x64xf32> -> vector<8x64xf32>
    %cst_4 = arith.constant 1.17549435E-38 : f32
    %10 = vector.broadcast %cst_4 : f32 to vector<8x64xf32>
    %11 = arith.maximumf %9, %10 : vector<8x64xf32>
    %12 = math.log %11 : vector<8x64xf32>
    %cst_5 = arith.constant 0.15384616 : f32
    %13 = vector.broadcast %cst_5 : f32 to vector<8x64xf32>
    %14 = arith.mulf %12, %13 : vector<8x64xf32>
    %15 = math.exp %14 : vector<8x64xf32>
    %c0_6 = arith.constant 0 : index
    %c0_7 = arith.constant 0 : index
    %16 = vector.load %arg3[%c0_6, %c0_7] : memref<8x64xf32, #tpu.memory_space<vmem>>, vector<8x64xf32>
    tpu.vector_store %arg3[%c0_6, %c0_7], %15 {strides = array<i32>} : memref<8x64xf32, #tpu.memory_space<vmem>>, vector<8x64xf32>,
    return
  }
  func.func @transform_0(%arg0: i32) -> (i32, i32) {
    %c0_i32 = arith.constant 0 : i32
    %c0_i32_0 = arith.constant 0 : i32
    return %arg0, %c0_i32 : i32, i32
  }
  func.func @transform_1(%arg0: i32) -> (i32, i32) {
    %c0_i32 = arith.constant 0 : i32
    %c0_i32_0 = arith.constant 0 : i32
    %c0_i32_1 = arith.constant 0 : i32
    return %c0_i32, %c0_i32_0 : i32, i32
  }
  func.func @transform_2(%arg0: i32) -> (i32, i32) {
    %c0_i32 = arith.constant 0 : i32
    %c0_i32_0 = arith.constant 0 : i32
    return %arg0, %c0_i32 : i32, i32
  }
}

</mosaic_0001>

<llo_original>
// kernel: tpu_custom_call.1
$region0: #{tpu_custom_call.1}
  #allocation0 [shape = 'u32[]', space=smem, size = 0x4, offset = 0x4, fixed_abs, tag = 'smem constant byte address 0x4 - core index']
  #allocation1 [shape = 'u32[144,128]{1,0:T(1,128)}', space=vmem, size = 0x12000, scoped, tag = 'internal scratch']
  %s0 = inlined_call_operand.vmem [shape: f32[8,256], index: 0, kind: input, shape index: {}]
  %s1 = inlined_call_operand.vmem [shape: f32[256,64], index: 1, kind: input, shape index: {}]
  %s2 = inlined_call_operand.hbm [shape: f32[8,64], index: 2, kind: output, shape index: {}]
  %s3 = sld [smem:[#allocation0]]
  $region18: #{tpu_custom_call.1} parent=0
    _
  %s5 = ssub.s32 1, %s3
  %s6 = scalar_select 0, %s5, %s3
  $region1: #{tpu_custom_call.1} parent=0
    #allocation2 [shape = 'u8[4096]{0}', space=vmem, size = 0x1000, scoped, tag = 'output window, operand 0, single buffered']
    #allocation3 [shape = 's32[1]{0}', space=sflag, size = 0x4, scoped, tag = 'scoped memory for tpu_custom_call.1']
    %7 = vsyncpa [#allocation3], 0
    // Predicated region
    $region2: #{tpu_custom_call.1} parent=1 // pred_check
      _
    $region3: #{tpu_custom_call.1} parent=1 // pred_check_branch
      %9 = sbr.rel (0) target = $region5
    $region4: #{tpu_custom_call.1} parent=1 // pred_region
      _
    $region5: #{tpu_custom_call.1} parent=1 // pred_fallthru
      _
    // Predicated region
    $region6: #{tpu_custom_call.1} parent=1 // pred_check
      _
    $region7: #{tpu_custom_call.1} parent=1 // pred_check_branch
      %11 = sbr.rel (0) target = $region9
    $region8: #{tpu_custom_call.1} parent=1 // pred_region
      _
    $region9: #{tpu_custom_call.1} parent=1 // pred_fallthru
      _
    %v12 = vld [vmem:[%s0] sm:$0xff]
    %v13 = vld [vmem:[%s0 + $0x8] sm:$0xff]
    %v14 = vmax.f32 %v12, 1e-06
    %v15 = vmax.f32 %v13, 1e-06
    %v16 = vmul.f32 %v14, %v14
    %v17 = vmul.f32 %v15, %v15
    %v18 = vmul.f32 %v16, %v16
    %v19 = vmul.f32 %v17, %v17
    %v20 = vmul.f32 %v16, %v18
    %v21 = vmul.f32 %v17, %v19
    %v22 = vrsqrt.pop %v14
    %v23 = vmul.f32 %v14, %v22
    %vm24 = vcmp.eq.f32.partialorder %v14, inf
    %v25 = vsel %vm24, %v14, %v23
    %vm26 = vcmp.eq.f32.partialorder %v14, 0.0
    %v27 = vand.u32 %v14, 2147483648
    %v28 = vsel %vm26, %v27, %v25
    %v29 = vrsqrt.pop %v15
    %v30 = vmul.f32 %v15, %v29
    %vm31 = vcmp.eq.f32.partialorder %v15, inf
    %v32 = vsel %vm31, %v15, %v30
    %vm33 = vcmp.eq.f32.partialorder %v15, 0.0
    %v34 = vand.u32 %v15, 2147483648
    %v35 = vsel %vm33, %v34, %v32
    %v36 = vmul.f32 %v20, %v28
    %v37 = vmul.f32 %v21, %v35
    %v38 = vld [vmem:[%s1] sm:$0xff]
    %v39 = vld [vmem:[%s1 + $0x8] sm:$0xff]
    %v40 = vld [vmem:[%s1 + $0x10] sm:$0xff]
    %v41 = vld [vmem:[%s1 + $0x18] sm:$0xff]
    %v42 = vld [vmem:[%s1 + $0x20] sm:$0xff]
    %v43 = vld [vmem:[%s1 + $0x28] sm:$0xff]
    %v44 = vld [vmem:[%s1 + $0x30] sm:$0xff]
    %v45 = vld [vmem:[%s1 + $0x38] sm:$0xff]
    %v46 = vld [vmem:[%s1 + $0x40] sm:$0xff]
    %v47 = vld [vmem:[%s1 + $0x48] sm:$0xff]
    %v48 = vld [vmem:[%s1 + $0x50] sm:$0xff]
    %v49 = vld [vmem:[%s1 + $0x58] sm:$0xff]
    %v50 = vld [vmem:[%s1 + $0x60] sm:$0xff]
    %v51 = vld [vmem:[%s1 + $0x68] sm:$0xff]
    %v52 = vld [vmem:[%s1 + $0x70] sm:$0xff]
    %v53 = vld [vmem:[%s1 + $0x78] sm:$0xff]
    %v54 = vld [vmem:[%s1 + $0x80] sm:$0xff]
    %v55 = vld [vmem:[%s1 + $0x88] sm:$0xff]
    %v56 = vld [vmem:[%s1 + $0x90] sm:$0xff]
    %v57 = vld [vmem:[%s1 + $0x98] sm:$0xff]
    %v58 = vld [vmem:[%s1 + $0xa0] sm:$0xff]
    %v59 = vld [vmem:[%s1 + $0xa8] sm:$0xff]
    %v60 = vld [vmem:[%s1 + $0xb0] sm:$0xff]
    %v61 = vld [vmem:[%s1 + $0xb8] sm:$0xff]
    %v62 = vld [vmem:[%s1 + $0xc0] sm:$0xff]
    %v63 = vld [vmem:[%s1 + $0xc8] sm:$0xff]
    %v64 = vld [vmem:[%s1 + $0xd0] sm:$0xff]
    %v65 = vld [vmem:[%s1 + $0xd8] sm:$0xff]
    %v66 = vld [vmem:[%s1 + $0xe0] sm:$0xff]
    %v67 = vld [vmem:[%s1 + $0xe8] sm:$0xff]
    %v68 = vld [vmem:[%s1 + $0xf0] sm:$0xff]
    %v69 = vld [vmem:[%s1 + $0xf8] sm:$0xff]
    %70 = vmatprep.subr.mxu0 0.0
    %v71 = vand.u32 %v53, 4294901760
    %72 = vmatpush1.msra.mxu0 %v71
    %73 = vmatprep.subr.mxu0 0.0
    %v74 = vand.u32 %v52, 4294901760
    %75 = vmatpush1.msra.mxu0 %v74
    %76 = vmatprep.subr.mxu0 0.0
    %v77 = vand.u32 %v51, 4294901760
    %78 = vmatpush1.msra.mxu0 %v77
    %79 = vmatprep.subr.mxu0 0.0
    %v80 = vand.u32 %v50, 4294901760
    %81 = vmatpush1.msra.mxu0 %v80
    %82 = vmatprep.subr.mxu0 0.0
    %v83 = vand.u32 %v49, 4294901760
    %84 = vmatpush1.msra.mxu0 %v83
    %85 = vmatprep.subr.mxu0 0.0
    %v86 = vand.u32 %v48, 4294901760
    %87 = vmatpush1.msra.mxu0 %v86
    %88 = vmatprep.subr.mxu0 0.0
    %v89 = vand.u32 %v47, 4294901760
    %90 = vmatpush1.msra.mxu0 %v89
    %91 = vmatprep.subr.mxu0 0.0
    %v92 = vand.u32 %v46, 4294901760
    %93 = vmatpush1.msra.mxu0 %v92
    %94 = vmatprep.subr.mxu0 0.0
    %v95 = vand.u32 %v45, 4294901760
    %96 = vmatpush1.msra.mxu0 %v95
    %97 = vmatprep.subr.mxu0 0.0
    %v98 = vand.u32 %v44, 4294901760
    %99 = vmatpush1.msra.mxu0 %v98
    %100 = vmatprep.subr.mxu0 0.0
    %v101 = vand.u32 %v43, 4294901760
    %102 = vmatpush1.msra.mxu0 %v101
    %103 = vmatprep.subr.mxu0 0.0
    %v104 = vand.u32 %v42, 4294901760
    %105 = vmatpush1.msra.mxu0 %v104
    %106 = vmatprep.subr.mxu0 0.0
    %v107 = vand.u32 %v41, 4294901760
    %108 = vmatpush1.msra.mxu0 %v107
    %109 = vmatprep.subr.mxu0 0.0
    %v110 = vand.u32 %v40, 4294901760
    %111 = vmatpush1.msra.mxu0 %v110
    %112 = vmatprep.subr.mxu0 0.0
    %v113 = vand.u32 %v39, 4294901760
    %114 = vmatpush1.msra.mxu0 %v113
    %115 = vmatprep.subr.mxu0 0.0
    %v116 = vand.u32 %v38, 4294901760
    %117 = vmatpush1.msra.mxu0 %v116
    %118 = vmatprep.subr.mxu0 0.0
    %v119 = vand.u32 %v69, 4294901760
    %120 = vmatpush2.msra.mxu0 %v119
    %121 = vmatprep.subr.mxu0 0.0
    %v122 = vand.u32 %v68, 4294901760
    %123 = vmatpush2.msra.mxu0 %v122
    %124 = vmatprep.subr.mxu0 0.0
    %v125 = vand.u32 %v67, 4294901760
    %126 = vmatpush2.msra.mxu0 %v125
    %127 = vmatprep.subr.mxu0 0.0
    %v128 = vand.u32 %v66, 4294901760
    %129 = vmatpush2.msra.mxu0 %v128
    %130 = vmatprep.subr.mxu0 0.0
    %v131 = vand.u32 %v65, 4294901760
    %132 = vmatpush2.msra.mxu0 %v131
    %133 = vmatprep.subr.mxu0 0.0
    %v134 = vand.u32 %v64, 4294901760
    %135 = vmatpush2.msra.mxu0 %v134
    %136 = vmatprep.subr.mxu0 0.0
    %v137 = vand.u32 %v63, 4294901760
    %138 = vmatpush2.msra.mxu0 %v137
    %139 = vmatprep.subr.mxu0 0.0
    %v140 = vand.u32 %v62, 4294901760
    %141 = vmatpush2.msra.mxu0 %v140
    %142 = vmatprep.subr.mxu0 0.0
    %v143 = vand.u32 %v61, 4294901760
    %144 = vmatpush2.msra.mxu0 %v143
    %145 = vmatprep.subr.mxu0 0.0
    %v146 = vand.u32 %v60, 4294901760
    %147 = vmatpush2.msra.mxu0 %v146
    %148 = vmatprep.subr.mxu0 0.0
    %v149 = vand.u32 %v59, 4294901760
    %150 = vmatpush2.msra.mxu0 %v149
    %151 = vmatprep.subr.mxu0 0.0
    %v152 = vand.u32 %v58, 4294901760
    %153 = vmatpush2.msra.mxu0 %v152
    %154 = vmatprep.subr.mxu0 0.0
    %v155 = vand.u32 %v57, 4294901760
    %156 = vmatpush2.msra.mxu0 %v155
    %157 = vmatprep.subr.mxu0 0.0
    %v158 = vand.u32 %v56, 4294901760
    %159 = vmatpush2.msra.mxu0 %v158
    %160 = vmatprep.subr.mxu0 0.0
    %v161 = vand.u32 %v55, 4294901760
    %162 = vmatpush2.msra.mxu0 %v161
    %163 = vmatprep.subr.mxu0 0.0
    %v164 = vand.u32 %v54, 4294901760
    %165 = vmatpush2.msra.mxu0 %v164
    %v166 = vand.u32 %v37, 4294901760
    %v167 = vsub.f32 %v37, %v166
    %v168 = vand.u32 %v167, 4294901760
    %v169 = vsub.f32 %v167, %v168
    %v170 = vand.u32 %v169, 4294901760
    %171 = vmatprep.mubr.f32.mxu0 %v170
    %v172 = vand.u32 %v36, 4294901760
    %v173 = vsub.f32 %v36, %v172
    %v174 = vand.u32 %v173, 4294901760
    %v175 = vsub.f32 %v173, %v174
    %v176 = vand.u32 %v175, 4294901760
    %177 = vmatmul.mubr.f32.gmra.mxu0 %v176
    %v178 = vpop.f32.mrf.mxu0
    %v179 = vadd.f32 0.0, %v178
    %v180 = vpop.f32.mrf.mxu0
    %181 = vdwg.mxu0
    %182 = vmatprep.subr.mxu0 0.0
    %v183 = vand.u32 %v53, 4294901760
    %v184 = vsub.f32 %v53, %v183
    %v185 = vand.u32 %v184, 4294901760
    %v186 = vsub.f32 %v184, %v185
    %v187 = vand.u32 %v186, 4294901760
    %188 = vmatpush1.msra.mxu0 %v187
    %189 = vmatprep.subr.mxu0 0.0
    %v190 = vand.u32 %v52, 4294901760
    %v191 = vsub.f32 %v52, %v190
    %v192 = vand.u32 %v191, 4294901760
    %v193 = vsub.f32 %v191, %v192
    %v194 = vand.u32 %v193, 4294901760
    %195 = vmatpush1.msra.mxu0 %v194
    %196 = vmatprep.subr.mxu0 0.0
    %v197 = vand.u32 %v51, 4294901760
    %v198 = vsub.f32 %v51, %v197
    %v199 = vand.u32 %v198, 4294901760
    %v200 = vsub.f32 %v198, %v199
    %v201 = vand.u32 %v200, 4294901760
    %202 = vmatpush1.msra.mxu0 %v201
    %203 = vmatprep.subr.mxu0 0.0
    %v204 = vand.u32 %v50, 4294901760
    %v205 = vsub.f32 %v50, %v204
    %v206 = vand.u32 %v205, 4294901760
    %v207 = vsub.f32 %v205, %v206
    %v208 = vand.u32 %v207, 4294901760
    %209 = vmatpush1.msra.mxu0 %v208
    %210 = vmatprep.subr.mxu0 0.0
    %v211 = vand.u32 %v49, 4294901760
    %v212 = vsub.f32 %v49, %v211
    %v213 = vand.u32 %v212, 4294901760
    %v214 = vsub.f32 %v212, %v213
    %v215 = vand.u32 %v214, 4294901760
    %216 = vmatpush1.msra.mxu0 %v215
    %217 = vmatprep.subr.mxu0 0.0
    %v218 = vand.u32 %v48, 4294901760
    %v219 = vsub.f32 %v48, %v218
    %v220 = vand.u32 %v219, 4294901760
    %v221 = vsub.f32 %v219, %v220
    %v222 = vand.u32 %v221, 4294901760
    %223 = vmatpush1.msra.mxu0 %v222
    %224 = vmatprep.subr.mxu0 0.0
    %v225 = vand.u32 %v47, 4294901760
    %v226 = vsub.f32 %v47, %v225
    %v227 = vand.u32 %v226, 4294901760
    %v228 = vsub.f32 %v226, %v227
    %v229 = vand.u32 %v228, 4294901760
    %230 = vmatpush1.msra.mxu0 %v229
    %231 = vmatprep.subr.mxu0 0.0
    %v232 = vand.u32 %v46, 4294901760
    %v233 = vsub.f32 %v46, %v232
    %v234 = vand.u32 %v233, 4294901760
    %v235 = vsub.f32 %v233, %v234
    %v236 = vand.u32 %v235, 4294901760
    %237 = vmatpush1.msra.mxu0 %v236
    %238 = vmatprep.subr.mxu0 0.0
    %v239 = vand.u32 %v45, 4294901760
    %v240 = vsub.f32 %v45, %v239
    %v241 = vand.u32 %v240, 4294901760
    %v242 = vsub.f32 %v240, %v241
    %v243 = vand.u32 %v242, 4294901760
    %244 = vmatpush1.msra.mxu0 %v243
    %245 = vmatprep.subr.mxu0 0.0
    %v246 = vand.u32 %v44, 4294901760
    %v247 = vsub.f32 %v44, %v246
    %v248 = vand.u32 %v247, 4294901760
    %v249 = vsub.f32 %v247, %v248
    %v250 = vand.u32 %v249, 4294901760
    %251 = vmatpush1.msra.mxu0 %v250
    %252 = vmatprep.subr.mxu0 0.0
    %v253 = vand.u32 %v43, 4294901760
    %v254 = vsub.f32 %v43, %v253
    %v255 = vand.u32 %v254, 4294901760
    %v256 = vsub.f32 %v254, %v255
    %v257 = vand.u32 %v256, 4294901760
    %258 = vmatpush1.msra.mxu0 %v257
    %259 = vmatprep.subr.mxu0 0.0
    %v260 = vand.u32 %v42, 4294901760
    %v261 = vsub.f32 %v42, %v260
    %v262 = vand.u32 %v261, 4294901760
    %v263 = vsub.f32 %v261, %v262
    %v264 = vand.u32 %v263, 4294901760
    %265 = vmatpush1.msra.mxu0 %v264
    %266 = vmatprep.subr.mxu0 0.0
    %v267 = vand.u32 %v41, 4294901760
    %v268 = vsub.f32 %v41, %v267
    %v269 = vand.u32 %v268, 4294901760
    %v270 = vsub.f32 %v268, %v269
    %v271 = vand.u32 %v270, 4294901760
    %272 = vmatpush1.msra.mxu0 %v271
    %273 = vmatprep.subr.mxu0 0.0
    %v274 = vand.u32 %v40, 4294901760
    %v275 = vsub.f32 %v40, %v274
    %v276 = vand.u32 %v275, 4294901760
    %v277 = vsub.f32 %v275, %v276
    %v278 = vand.u32 %v277, 4294901760
    %279 = vmatpush1.msra.mxu0 %v278
    %280 = vmatprep.subr.mxu0 0.0
    %v281 = vand.u32 %v39, 4294901760
    %v282 = vsub.f32 %v39, %v281
    %v283 = vand.u32 %v282, 4294901760
    %v284 = vsub.f32 %v282, %v283
    %v285 = vand.u32 %v284, 4294901760
    %286 = vmatpush1.msra.mxu0 %v285
    %287 = vmatprep.subr.mxu0 0.0
    %v288 = vand.u32 %v38, 4294901760
    %v289 = vsub.f32 %v38, %v288
    %v290 = vand.u32 %v289, 4294901760
    %v291 = vsub.f32 %v289, %v290
    %v292 = vand.u32 %v291, 4294901760
    %293 = vmatpush1.msra.mxu0 %v292
    %294 = vmatprep.subr.mxu0 0.0
    %v295 = vand.u32 %v69, 4294901760
    %v296 = vsub.f32 %v69, %v295
    %v297 = vand.u32 %v296, 4294901760
    %v298 = vsub.f32 %v296, %v297
    %v299 = vand.u32 %v298, 4294901760
    %300 = vmatpush2.msra.mxu0 %v299
    %301 = vmatprep.subr.mxu0 0.0
    %v302 = vand.u32 %v68, 4294901760
    %v303 = vsub.f32 %v68, %v302
    %v304 = vand.u32 %v303, 4294901760
    %v305 = vsub.f32 %v303, %v304
    %v306 = vand.u32 %v305, 4294901760
    %307 = vmatpush2.msra.mxu0 %v306
    %308 = vmatprep.subr.mxu0 0.0
    %v309 = vand.u32 %v67, 4294901760
    %v310 = vsub.f32 %v67, %v309
    %v311 = vand.u32 %v310, 4294901760
    %v312 = vsub.f32 %v310, %v311
    %v313 = vand.u32 %v312, 4294901760
    %314 = vmatpush2.msra.mxu0 %v313
    %315 = vmatprep.subr.mxu0 0.0
    %v316 = vand.u32 %v66, 4294901760
    %v317 = vsub.f32 %v66, %v316
    %v318 = vand.u32 %v317, 4294901760
    %v319 = vsub.f32 %v317, %v318
    %v320 = vand.u32 %v319, 4294901760
    %321 = vmatpush2.msra.mxu0 %v320
    %322 = vmatprep.subr.mxu0 0.0
    %v323 = vand.u32 %v65, 4294901760
    %v324 = vsub.f32 %v65, %v323
    %v325 = vand.u32 %v324, 4294901760
    %v326 = vsub.f32 %v324, %v325
    %v327 = vand.u32 %v326, 4294901760
    %328 = vmatpush2.msra.mxu0 %v327
    %329 = vmatprep.subr.mxu0 0.0
    %v330 = vand.u32 %v64, 4294901760
    %v331 = vsub.f32 %v64, %v330
    %v332 = vand.u32 %v331, 4294901760
    %v333 = vsub.f32 %v331, %v332
    %v334 = vand.u32 %v333, 4294901760
    %335 = vmatpush2.msra.mxu0 %v334
    %336 = vmatprep.subr.mxu0 0.0
    %v337 = vand.u32 %v63, 4294901760
    %v338 = vsub.f32 %v63, %v337
    %v339 = vand.u32 %v338, 4294901760
    %v340 = vsub.f32 %v338, %v339
    %v341 = vand.u32 %v340, 4294901760
    %342 = vmatpush2.msra.mxu0 %v341
    %343 = vmatprep.subr.mxu0 0.0
    %v344 = vand.u32 %v62, 4294901760
    %v345 = vsub.f32 %v62, %v344
    %v346 = vand.u32 %v345, 4294901760
    %v347 = vsub.f32 %v345, %v346
    %v348 = vand.u32 %v347, 4294901760
    %349 = vmatpush2.msra.mxu0 %v348
    %350 = vmatprep.subr.mxu0 0.0
    %v351 = vand.u32 %v61, 4294901760
    %v352 = vsub.f32 %v61, %v351
    %v353 = vand.u32 %v352, 4294901760
    %v354 = vsub.f32 %v352, %v353
    %v355 = vand.u32 %v354, 4294901760
    %356 = vmatpush2.msra.mxu0 %v355
    %357 = vmatprep.subr.mxu0 0.0
    %v358 = vand.u32 %v60, 4294901760
    %v359 = vsub.f32 %v60, %v358
    %v360 = vand.u32 %v359, 4294901760
    %v361 = vsub.f32 %v359, %v360
    %v362 = vand.u32 %v361, 4294901760
    %363 = vmatpush2.msra.mxu0 %v362
    %364 = vmatprep.subr.mxu0 0.0
    %v365 = vand.u32 %v59, 4294901760
    %v366 = vsub.f32 %v59, %v365
    %v367 = vand.u32 %v366, 4294901760
    %v368 = vsub.f32 %v366, %v367
    %v369 = vand.u32 %v368, 4294901760
    %370 = vmatpush2.msra.mxu0 %v369
    %371 = vmatprep.subr.mxu0 0.0
    %v372 = vand.u32 %v58, 4294901760
    %v373 = vsub.f32 %v58, %v372
    %v374 = vand.u32 %v373, 4294901760
    %v375 = vsub.f32 %v373, %v374
    %v376 = vand.u32 %v375, 4294901760
    %377 = vmatpush2.msra.mxu0 %v376
    %378 = vmatprep.subr.mxu0 0.0
    %v379 = vand.u32 %v57, 4294901760
    %v380 = vsub.f32 %v57, %v379
    %v381 = vand.u32 %v380, 4294901760
    %v382 = vsub.f32 %v380, %v381
    %v383 = vand.u32 %v382, 4294901760
    %384 = vmatpush2.msra.mxu0 %v383
    %385 = vmatprep.subr.mxu0 0.0
    %v386 = vand.u32 %v56, 4294901760
    %v387 = vsub.f32 %v56, %v386
    %v388 = vand.u32 %v387, 4294901760
    %v389 = vsub.f32 %v387, %v388
    %v390 = vand.u32 %v389, 4294901760
    %391 = vmatpush2.msra.mxu0 %v390
    %392 = vmatprep.subr.mxu0 0.0
    %v393 = vand.u32 %v55, 4294901760
    %v394 = vsub.f32 %v55, %v393
    %v395 = vand.u32 %v394, 4294901760
    %v396 = vsub.f32 %v394, %v395
    %v397 = vand.u32 %v396, 4294901760
    %398 = vmatpush2.msra.mxu0 %v397
    %399 = vmatprep.subr.mxu0 0.0
    %v400 = vand.u32 %v54, 4294901760
    %v401 = vsub.f32 %v54, %v400
    %v402 = vand.u32 %v401, 4294901760
    %v403 = vsub.f32 %v401, %v402
    %v404 = vand.u32 %v403, 4294901760
    %405 = vmatpush2.msra.mxu0 %v404
    %v406 = vand.u32 %v37, 4294901760
    %407 = vmatprep.mubr.f32.mxu0 %v406
    %v408 = vand.u32 %v36, 4294901760
    %409 = vmatmul.mubr.f32.gmra.mxu0 %v408
    %v410 = vpop.f32.mrf.mxu0
    %v411 = vadd.f32 %v179, %v410
    %v412 = vpop.f32.mrf.mxu0
    %413 = vdwg.mxu0
    %414 = vmatprep.subr.mxu0 0.0
    %v415 = vand.u32 %v53, 4294901760
    %v416 = vsub.f32 %v53, %v415
    %417 = vmatpush1.msra.mxu0 %v416
    %418 = vmatprep.subr.mxu0 0.0
    %v419 = vand.u32 %v52, 4294901760
    %v420 = vsub.f32 %v52, %v419
    %421 = vmatpush1.msra.mxu0 %v420
    %422 = vmatprep.subr.mxu0 0.0
    %v423 = vand.u32 %v51, 4294901760
    %v424 = vsub.f32 %v51, %v423
    %425 = vmatpush1.msra.mxu0 %v424
    %426 = vmatprep.subr.mxu0 0.0
    %v427 = vand.u32 %v50, 4294901760
    %v428 = vsub.f32 %v50, %v427
    %429 = vmatpush1.msra.mxu0 %v428
    %430 = vmatprep.subr.mxu0 0.0
    %v431 = vand.u32 %v49, 4294901760
    %v432 = vsub.f32 %v49, %v431
    %433 = vmatpush1.msra.mxu0 %v432
    %434 = vmatprep.subr.mxu0 0.0
    %v435 = vand.u32 %v48, 4294901760
    %v436 = vsub.f32 %v48, %v435
    %437 = vmatpush1.msra.mxu0 %v436
    %438 = vmatprep.subr.mxu0 0.0
    %v439 = vand.u32 %v47, 4294901760
    %v440 = vsub.f32 %v47, %v439
    %441 = vmatpush1.msra.mxu0 %v440
    %442 = vmatprep.subr.mxu0 0.0
    %v443 = vand.u32 %v46, 4294901760
    %v444 = vsub.f32 %v46, %v443
    %445 = vmatpush1.msra.mxu0 %v444
    %446 = vmatprep.subr.mxu0 0.0
    %v447 = vand.u32 %v45, 4294901760
    %v448 = vsub.f32 %v45, %v447
    %449 = vmatpush1.msra.mxu0 %v448
    %450 = vmatprep.subr.mxu0 0.0
    %v451 = vand.u32 %v44, 4294901760
    %v452 = vsub.f32 %v44, %v451
    %453 = vmatpush1.msra.mxu0 %v452
    %454 = vmatprep.subr.mxu0 0.0
    %v455 = vand.u32 %v43, 4294901760
    %v456 = vsub.f32 %v43, %v455
    %457 = vmatpush1.msra.mxu0 %v456
    %458 = vmatprep.subr.mxu0 0.0
    %v459 = vand.u32 %v42, 4294901760
    %v460 = vsub.f32 %v42, %v459
    %461 = vmatpush1.msra.mxu0 %v460
    %462 = vmatprep.subr.mxu0 0.0
    %v463 = vand.u32 %v41, 4294901760
    %v464 = vsub.f32 %v41, %v463
    %465 = vmatpush1.msra.mxu0 %v464
    %466 = vmatprep.subr.mxu0 0.0
    %v467 = vand.u32 %v40, 4294901760
    %v468 = vsub.f32 %v40, %v467
    %469 = vmatpush1.msra.mxu0 %v468
    %470 = vmatprep.subr.mxu0 0.0
    %v471 = vand.u32 %v39, 4294901760
    %v472 = vsub.f32 %v39, %v471
    %473 = vmatpush1.msra.mxu0 %v472
    %474 = vmatprep.subr.mxu0 0.0
    %v475 = vand.u32 %v38, 4294901760
    %v476 = vsub.f32 %v38, %v475
    %477 = vmatpush1.msra.mxu0 %v476
    %478 = vmatprep.subr.mxu0 0.0
    %v479 = vand.u32 %v69, 4294901760
    %v480 = vsub.f32 %v69, %v479
    %481 = vmatpush2.msra.mxu0 %v480
    %482 = vmatprep.subr.mxu0 0.0
    %v483 = vand.u32 %v68, 4294901760
    %v484 = vsub.f32 %v68, %v483
    %485 = vmatpush2.msra.mxu0 %v484
    %486 = vmatprep.subr.mxu0 0.0
    %v487 = vand.u32 %v67, 4294901760
    %v488 = vsub.f32 %v67, %v487
    %489 = vmatpush2.msra.mxu0 %v488
    %490 = vmatprep.subr.mxu0 0.0
    %v491 = vand.u32 %v66, 4294901760
    %v492 = vsub.f32 %v66, %v491
    %493 = vmatpush2.msra.mxu0 %v492
    %494 = vmatprep.subr.mxu0 0.0
    %v495 = vand.u32 %v65, 4294901760
    %v496 = vsub.f32 %v65, %v495
    %497 = vmatpush2.msra.mxu0 %v496
    %498 = vmatprep.subr.mxu0 0.0
    %v499 = vand.u32 %v64, 4294901760
    %v500 = vsub.f32 %v64, %v499
    %501 = vmatpush2.msra.mxu0 %v500
    %502 = vmatprep.subr.mxu0 0.0
    %v503 = vand.u32 %v63, 4294901760
    %v504 = vsub.f32 %v63, %v503
    %505 = vmatpush2.msra.mxu0 %v504
    %506 = vmatprep.subr.mxu0 0.0
    %v507 = vand.u32 %v62, 4294901760
    %v508 = vsub.f32 %v62, %v507
    %509 = vmatpush2.msra.mxu0 %v508
    %510 = vmatprep.subr.mxu0 0.0
    %v511 = vand.u32 %v61, 4294901760
    %v512 = vsub.f32 %v61, %v511
    %513 = vmatpush2.msra.mxu0 %v512
    %514 = vmatprep.subr.mxu0 0.0
    %v515 = vand.u32 %v60, 4294901760
    %v516 = vsub.f32 %v60, %v515
    %517 = vmatpush2.msra.mxu0 %v516
    %518 = vmatprep.subr.mxu0 0.0
    %v519 = vand.u32 %v59, 4294901760
    %v520 = vsub.f32 %v59, %v519
    %521 = vmatpush2.msra.mxu0 %v520
    %522 = vmatprep.subr.mxu0 0.0
    %v523 = vand.u32 %v58, 4294901760
    %v524 = vsub.f32 %v58, %v523
    %525 = vmatpush2.msra.mxu0 %v524
    %526 = vmatprep.subr.mxu0 0.0
    %v527 = vand.u32 %v57, 4294901760
    %v528 = vsub.f32 %v57, %v527
    %529 = vmatpush2.msra.mxu0 %v528
    %530 = vmatprep.subr.mxu0 0.0
    %v531 = vand.u32 %v56, 4294901760
    %v532 = vsub.f32 %v56, %v531
    %533 = vmatpush2.msra.mxu0 %v532
    %534 = vmatprep.subr.mxu0 0.0
    %v535 = vand.u32 %v55, 4294901760
    %v536 = vsub.f32 %v55, %v535
    %537 = vmatpush2.msra.mxu0 %v536
    %538 = vmatprep.subr.mxu0 0.0
    %v539 = vand.u32 %v54, 4294901760
    %v540 = vsub.f32 %v54, %v539
    %541 = vmatpush2.msra.mxu0 %v540
    %v542 = vand.u32 %v37, 4294901760
    %v543 = vsub.f32 %v37, %v542
    %544 = vmatprep.mubr.f32.mxu0 %v543
    %v545 = vand.u32 %v36, 4294901760
    %v546 = vsub.f32 %v36, %v545
    %547 = vmatmul.mubr.f32.gmra.mxu0 %v546
    %v548 = vpop.f32.mrf.mxu0
    %v549 = vadd.f32 %v411, %v548
    %v550 = vpop.f32.mrf.mxu0
    %551 = vdwg.mxu0
    %552 = vmatprep.subr.mxu0 0.0
    %v553 = vand.u32 %v53, 4294901760
    %554 = vmatpush1.msra.mxu0 %v553
    %555 = vmatprep.subr.mxu0 0.0
    %v556 = vand.u32 %v52, 4294901760
    %557 = vmatpush1.msra.mxu0 %v556
    %558 = vmatprep.subr.mxu0 0.0
    %v559 = vand.u32 %v51, 4294901760
    %560 = vmatpush1.msra.mxu0 %v559
    %561 = vmatprep.subr.mxu0 0.0
    %v562 = vand.u32 %v50, 4294901760
    %563 = vmatpush1.msra.mxu0 %v562
    %564 = vmatprep.subr.mxu0 0.0
    %v565 = vand.u32 %v49, 4294901760
    %566 = vmatpush1.msra.mxu0 %v565
    %567 = vmatprep.subr.mxu0 0.0
    %v568 = vand.u32 %v48, 4294901760
    %569 = vmatpush1.msra.mxu0 %v568
    %570 = vmatprep.subr.mxu0 0.0
    %v571 = vand.u32 %v47, 4294901760
    %572 = vmatpush1.msra.mxu0 %v571
    %573 = vmatprep.subr.mxu0 0.0
    %v574 = vand.u32 %v46, 4294901760
    %575 = vmatpush1.msra.mxu0 %v574
    %576 = vmatprep.subr.mxu0 0.0
    %v577 = vand.u32 %v45, 4294901760
    %578 = vmatpush1.msra.mxu0 %v577
    %579 = vmatprep.subr.mxu0 0.0
    %v580 = vand.u32 %v44, 4294901760
    %581 = vmatpush1.msra.mxu0 %v580
    %582 = vmatprep.subr.mxu0 0.0
    %v583 = vand.u32 %v43, 4294901760
    %584 = vmatpush1.msra.mxu0 %v583
    %585 = vmatprep.subr.mxu0 0.0
    %v586 = vand.u32 %v42, 4294901760
    %587 = vmatpush1.msra.mxu0 %v586
    %588 = vmatprep.subr.mxu0 0.0
    %v589 = vand.u32 %v41, 4294901760
    %590 = vmatpush1.msra.mxu0 %v589
    %591 = vmatprep.subr.mxu0 0.0
    %v592 = vand.u32 %v40, 4294901760
    %593 = vmatpush1.msra.mxu0 %v592
    %594 = vmatprep.subr.mxu0 0.0
    %v595 = vand.u32 %v39, 4294901760
    %596 = vmatpush1.msra.mxu0 %v595
    %597 = vmatprep.subr.mxu0 0.0
    %v598 = vand.u32 %v38, 4294901760
    %599 = vmatpush1.msra.mxu0 %v598
    %600 = vmatprep.subr.mxu0 0.0
    %v601 = vand.u32 %v69, 4294901760
    %602 = vmatpush2.msra.mxu0 %v601
    %603 = vmatprep.subr.mxu0 0.0
    %v604 = vand.u32 %v68, 4294901760
    %605 = vmatpush2.msra.mxu0 %v604
    %606 = vmatprep.subr.mxu0 0.0
    %v607 = vand.u32 %v67, 4294901760
    %608 = vmatpush2.msra.mxu0 %v607
    %609 = vmatprep.subr.mxu0 0.0
    %v610 = vand.u32 %v66, 4294901760
    %611 = vmatpush2.msra.mxu0 %v610
    %612 = vmatprep.subr.mxu0 0.0
    %v613 = vand.u32 %v65, 4294901760
    %614 = vmatpush2.msra.mxu0 %v613
    %615 = vmatprep.subr.mxu0 0.0
    %v616 = vand.u32 %v64, 4294901760
    %617 = vmatpush2.msra.mxu0 %v616
    %618 = vmatprep.subr.mxu0 0.0
    %v619 = vand.u32 %v63, 4294901760
    %620 = vmatpush2.msra.mxu0 %v619
    %621 = vmatprep.subr.mxu0 0.0
    %v622 = vand.u32 %v62, 4294901760
    %623 = vmatpush2.msra.mxu0 %v622
    %624 = vmatprep.subr.mxu0 0.0
    %v625 = vand.u32 %v61, 4294901760
    %626 = vmatpush2.msra.mxu0 %v625
    %627 = vmatprep.subr.mxu0 0.0
    %v628 = vand.u32 %v60, 4294901760
    %629 = vmatpush2.msra.mxu0 %v628
    %630 = vmatprep.subr.mxu0 0.0
    %v631 = vand.u32 %v59, 4294901760
    %632 = vmatpush2.msra.mxu0 %v631
    %633 = vmatprep.subr.mxu0 0.0
    %v634 = vand.u32 %v58, 4294901760
    %635 = vmatpush2.msra.mxu0 %v634
    %636 = vmatprep.subr.mxu0 0.0
    %v637 = vand.u32 %v57, 4294901760
    %638 = vmatpush2.msra.mxu0 %v637
    %639 = vmatprep.subr.mxu0 0.0
    %v640 = vand.u32 %v56, 4294901760
    %641 = vmatpush2.msra.mxu0 %v640
    %642 = vmatprep.subr.mxu0 0.0
    %v643 = vand.u32 %v55, 4294901760
    %644 = vmatpush2.msra.mxu0 %v643
    %645 = vmatprep.subr.mxu0 0.0
    %v646 = vand.u32 %v54, 4294901760
    %647 = vmatpush2.msra.mxu0 %v646
    %v648 = vand.u32 %v37, 4294901760
    %v649 = vsub.f32 %v37, %v648
    %v650 = vand.u32 %v649, 4294901760
    %651 = vmatprep.mubr.f32.mxu0 %v650
    %v652 = vand.u32 %v36, 4294901760
    %v653 = vsub.f32 %v36, %v652
    %v654 = vand.u32 %v653, 4294901760
    %655 = vmatmul.mubr.f32.gmra.mxu0 %v654
    %v656 = vpop.f32.mrf.mxu0
    %v657 = vadd.f32 %v549, %v656
    %v658 = vpop.f32.mrf.mxu0
    %659 = vdwg.mxu0
    %660 = vmatprep.subr.mxu0 0.0
    %v661 = vand.u32 %v53, 4294901760
    %v662 = vsub.f32 %v53, %v661
    %v663 = vand.u32 %v662, 4294901760
    %664 = vmatpush1.msra.mxu0 %v663
    %665 = vmatprep.subr.mxu0 0.0
    %v666 = vand.u32 %v52, 4294901760
    %v667 = vsub.f32 %v52, %v666
    %v668 = vand.u32 %v667, 4294901760
    %669 = vmatpush1.msra.mxu0 %v668
    %670 = vmatprep.subr.mxu0 0.0
    %v671 = vand.u32 %v51, 4294901760
    %v672 = vsub.f32 %v51, %v671
    %v673 = vand.u32 %v672, 4294901760
    %674 = vmatpush1.msra.mxu0 %v673
    %675 = vmatprep.subr.mxu0 0.0
    %v676 = vand.u32 %v50, 4294901760
    %v677 = vsub.f32 %v50, %v676
    %v678 = vand.u32 %v677, 4294901760
    %679 = vmatpush1.msra.mxu0 %v678
    %680 = vmatprep.subr.mxu0 0.0
    %v681 = vand.u32 %v49, 4294901760
    %v682 = vsub.f32 %v49, %v681
    %v683 = vand.u32 %v682, 4294901760
    %684 = vmatpush1.msra.mxu0 %v683
    %685 = vmatprep.subr.mxu0 0.0
    %v686 = vand.u32 %v48, 4294901760
    %v687 = vsub.f32 %v48, %v686
    %v688 = vand.u32 %v687, 4294901760
    %689 = vmatpush1.msra.mxu0 %v688
    %690 = vmatprep.subr.mxu0 0.0
    %v691 = vand.u32 %v47, 4294901760
    %v692 = vsub.f32 %v47, %v691
    %v693 = vand.u32 %v692, 4294901760
    %694 = vmatpush1.msra.mxu0 %v693
    %695 = vmatprep.subr.mxu0 0.0
    %v696 = vand.u32 %v46, 4294901760
    %v697 = vsub.f32 %v46, %v696
    %v698 = vand.u32 %v697, 4294901760
    %699 = vmatpush1.msra.mxu0 %v698
    %700 = vmatprep.subr.mxu0 0.0
    %v701 = vand.u32 %v45, 4294901760
    %v702 = vsub.f32 %v45, %v701
    %v703 = vand.u32 %v702, 4294901760
    %704 = vmatpush1.msra.mxu0 %v703
    %705 = vmatprep.subr.mxu0 0.0
    %v706 = vand.u32 %v44, 4294901760
    %v707 = vsub.f32 %v44, %v706
    %v708 = vand.u32 %v707, 4294901760
    %709 = vmatpush1.msra.mxu0 %v708
    %710 = vmatprep.subr.mxu0 0.0
    %v711 = vand.u32 %v43, 4294901760
    %v712 = vsub.f32 %v43, %v711
    %v713 = vand.u32 %v712, 4294901760
    %714 = vmatpush1.msra.mxu0 %v713
    %715 = vmatprep.subr.mxu0 0.0
    %v716 = vand.u32 %v42, 4294901760
    %v717 = vsub.f32 %v42, %v716
    %v718 = vand.u32 %v717, 4294901760
    %719 = vmatpush1.msra.mxu0 %v718
    %720 = vmatprep.subr.mxu0 0.0
    %v721 = vand.u32 %v41, 4294901760
    %v722 = vsub.f32 %v41, %v721
    %v723 = vand.u32 %v722, 4294901760
    %724 = vmatpush1.msra.mxu0 %v723
    %725 = vmatprep.subr.mxu0 0.0
    %v726 = vand.u32 %v40, 4294901760
    %v727 = vsub.f32 %v40, %v726
    %v728 = vand.u32 %v727, 4294901760
    %729 = vmatpush1.msra.mxu0 %v728
    %730 = vmatprep.subr.mxu0 0.0
    %v731 = vand.u32 %v39, 4294901760
    %v732 = vsub.f32 %v39, %v731
    %v733 = vand.u32 %v732, 4294901760
    %734 = vmatpush1.msra.mxu0 %v733
    %735 = vmatprep.subr.mxu0 0.0
    %v736 = vand.u32 %v38, 4294901760
    %v737 = vsub.f32 %v38, %v736
    %v738 = vand.u32 %v737, 4294901760
    %739 = vmatpush1.msra.mxu0 %v738
    %740 = vmatprep.subr.mxu0 0.0
    %v741 = vand.u32 %v69, 4294901760
    %v742 = vsub.f32 %v69, %v741
    %v743 = vand.u32 %v742, 4294901760
    %744 = vmatpush2.msra.mxu0 %v743
    %745 = vmatprep.subr.mxu0 0.0
    %v746 = vand.u32 %v68, 4294901760
    %v747 = vsub.f32 %v68, %v746
    %v748 = vand.u32 %v747, 4294901760
    %749 = vmatpush2.msra.mxu0 %v748
    %750 = vmatprep.subr.mxu0 0.0
    %v751 = vand.u32 %v67, 4294901760
    %v752 = vsub.f32 %v67, %v751
    %v753 = vand.u32 %v752, 4294901760
    %754 = vmatpush2.msra.mxu0 %v753
    %755 = vmatprep.subr.mxu0 0.0
    %v756 = vand.u32 %v66, 4294901760
    %v757 = vsub.f32 %v66, %v756
    %v758 = vand.u32 %v757, 4294901760
    %759 = vmatpush2.msra.mxu0 %v758
    %760 = vmatprep.subr.mxu0 0.0
    %v761 = vand.u32 %v65, 4294901760
    %v762 = vsub.f32 %v65, %v761
    %v763 = vand.u32 %v762, 4294901760
    %764 = vmatpush2.msra.mxu0 %v763
    %765 = vmatprep.subr.mxu0 0.0
    %v766 = vand.u32 %v64, 4294901760
    %v767 = vsub.f32 %v64, %v766
    %v768 = vand.u32 %v767, 4294901760
    %769 = vmatpush2.msra.mxu0 %v768
    %770 = vmatprep.subr.mxu0 0.0
    %v771 = vand.u32 %v63, 4294901760
    %v772 = vsub.f32 %v63, %v771
    %v773 = vand.u32 %v772, 4294901760
    %774 = vmatpush2.msra.mxu0 %v773
    %775 = vmatprep.subr.mxu0 0.0
    %v776 = vand.u32 %v62, 4294901760
    %v777 = vsub.f32 %v62, %v776
    %v778 = vand.u32 %v777, 4294901760
    %779 = vmatpush2.msra.mxu0 %v778
    %780 = vmatprep.subr.mxu0 0.0
    %v781 = vand.u32 %v61, 4294901760
    %v782 = vsub.f32 %v61, %v781
    %v783 = vand.u32 %v782, 4294901760
    %784 = vmatpush2.msra.mxu0 %v783
    %785 = vmatprep.subr.mxu0 0.0
    %v786 = vand.u32 %v60, 4294901760
    %v787 = vsub.f32 %v60, %v786
    %v788 = vand.u32 %v787, 4294901760
    %789 = vmatpush2.msra.mxu0 %v788
    %790 = vmatprep.subr.mxu0 0.0
    %v791 = vand.u32 %v59, 4294901760
    %v792 = vsub.f32 %v59, %v791
    %v793 = vand.u32 %v792, 4294901760
    %794 = vmatpush2.msra.mxu0 %v793
    %795 = vmatprep.subr.mxu0 0.0
    %v796 = vand.u32 %v58, 4294901760
    %v797 = vsub.f32 %v58, %v796
    %v798 = vand.u32 %v797, 4294901760
    %799 = vmatpush2.msra.mxu0 %v798
    %800 = vmatprep.subr.mxu0 0.0
    %v801 = vand.u32 %v57, 4294901760
    %v802 = vsub.f32 %v57, %v801
    %v803 = vand.u32 %v802, 4294901760
    %804 = vmatpush2.msra.mxu0 %v803
    %805 = vmatprep.subr.mxu0 0.0
    %v806 = vand.u32 %v56, 4294901760
    %v807 = vsub.f32 %v56, %v806
    %v808 = vand.u32 %v807, 4294901760
    %809 = vmatpush2.msra.mxu0 %v808
    %810 = vmatprep.subr.mxu0 0.0
    %v811 = vand.u32 %v55, 4294901760
    %v812 = vsub.f32 %v55, %v811
    %v813 = vand.u32 %v812, 4294901760
    %814 = vmatpush2.msra.mxu0 %v813
    %815 = vmatprep.subr.mxu0 0.0
    %v816 = vand.u32 %v54, 4294901760
    %v817 = vsub.f32 %v54, %v816
    %v818 = vand.u32 %v817, 4294901760
    %819 = vmatpush2.msra.mxu0 %v818
    %v820 = vand.u32 %v37, 4294901760
    %821 = vmatprep.mubr.f32.mxu0 %v820
    %v822 = vand.u32 %v36, 4294901760
    %823 = vmatmul.mubr.f32.gmra.mxu0 %v822
    %v824 = vpop.f32.mrf.mxu0
    %v825 = vadd.f32 %v657, %v824
    %v826 = vpop.f32.mrf.mxu0
    %827 = vdwg.mxu0
    %828 = vmatprep.subr.mxu0 0.0
    %v829 = vand.u32 %v53, 4294901760
    %830 = vmatpush1.msra.mxu0 %v829
    %831 = vmatprep.subr.mxu0 0.0
    %v832 = vand.u32 %v52, 4294901760
    %833 = vmatpush1.msra.mxu0 %v832
    %834 = vmatprep.subr.mxu0 0.0
    %v835 = vand.u32 %v51, 4294901760
    %836 = vmatpush1.msra.mxu0 %v835
    %837 = vmatprep.subr.mxu0 0.0
    %v838 = vand.u32 %v50, 4294901760
    %839 = vmatpush1.msra.mxu0 %v838
    %840 = vmatprep.subr.mxu0 0.0
    %v841 = vand.u32 %v49, 4294901760
    %842 = vmatpush1.msra.mxu0 %v841
    %843 = vmatprep.subr.mxu0 0.0
    %v844 = vand.u32 %v48, 4294901760
    %845 = vmatpush1.msra.mxu0 %v844
    %846 = vmatprep.subr.mxu0 0.0
    %v847 = vand.u32 %v47, 4294901760
    %848 = vmatpush1.msra.mxu0 %v847
    %849 = vmatprep.subr.mxu0 0.0
    %v850 = vand.u32 %v46, 4294901760
    %851 = vmatpush1.msra.mxu0 %v850
    %852 = vmatprep.subr.mxu0 0.0
    %v853 = vand.u32 %v45, 4294901760
    %854 = vmatpush1.msra.mxu0 %v853
    %855 = vmatprep.subr.mxu0 0.0
    %v856 = vand.u32 %v44, 4294901760
    %857 = vmatpush1.msra.mxu0 %v856
    %858 = vmatprep.subr.mxu0 0.0
    %v859 = vand.u32 %v43, 4294901760
    %860 = vmatpush1.msra.mxu0 %v859
    %861 = vmatprep.subr.mxu0 0.0
    %v862 = vand.u32 %v42, 4294901760
    %863 = vmatpush1.msra.mxu0 %v862
    %864 = vmatprep.subr.mxu0 0.0
    %v865 = vand.u32 %v41, 4294901760
    %866 = vmatpush1.msra.mxu0 %v865
    %867 = vmatprep.subr.mxu0 0.0
    %v868 = vand.u32 %v40, 4294901760
    %869 = vmatpush1.msra.mxu0 %v868
    %870 = vmatprep.subr.mxu0 0.0
    %v871 = vand.u32 %v39, 4294901760
    %872 = vmatpush1.msra.mxu0 %v871
    %873 = vmatprep.subr.mxu0 0.0
    %v874 = vand.u32 %v38, 4294901760
    %875 = vmatpush1.msra.mxu0 %v874
    %876 = vmatprep.subr.mxu0 0.0
    %v877 = vand.u32 %v69, 4294901760
    %878 = vmatpush2.msra.mxu0 %v877
    %879 = vmatprep.subr.mxu0 0.0
    %v880 = vand.u32 %v68, 4294901760
    %881 = vmatpush2.msra.mxu0 %v880
    %882 = vmatprep.subr.mxu0 0.0
    %v883 = vand.u32 %v67, 4294901760
    %884 = vmatpush2.msra.mxu0 %v883
    %885 = vmatprep.subr.mxu0 0.0
    %v886 = vand.u32 %v66, 4294901760
    %887 = vmatpush2.msra.mxu0 %v886
    %888 = vmatprep.subr.mxu0 0.0
    %v889 = vand.u32 %v65, 4294901760
    %890 = vmatpush2.msra.mxu0 %v889
    %891 = vmatprep.subr.mxu0 0.0
    %v892 = vand.u32 %v64, 4294901760
    %893 = vmatpush2.msra.mxu0 %v892
    %894 = vmatprep.subr.mxu0 0.0
    %v895 = vand.u32 %v63, 4294901760
    %896 = vmatpush2.msra.mxu0 %v895
    %897 = vmatprep.subr.mxu0 0.0
    %v898 = vand.u32 %v62, 4294901760
    %899 = vmatpush2.msra.mxu0 %v898
    %900 = vmatprep.subr.mxu0 0.0
    %v901 = vand.u32 %v61, 4294901760
    %902 = vmatpush2.msra.mxu0 %v901
    %903 = vmatprep.subr.mxu0 0.0
    %v904 = vand.u32 %v60, 4294901760
    %905 = vmatpush2.msra.mxu0 %v904
    %906 = vmatprep.subr.mxu0 0.0
    %v907 = vand.u32 %v59, 4294901760
    %908 = vmatpush2.msra.mxu0 %v907
    %909 = vmatprep.subr.mxu0 0.0
    %v910 = vand.u32 %v58, 4294901760
    %911 = vmatpush2.msra.mxu0 %v910
    %912 = vmatprep.subr.mxu0 0.0
    %v913 = vand.u32 %v57, 4294901760
    %914 = vmatpush2.msra.mxu0 %v913
    %915 = vmatprep.subr.mxu0 0.0
    %v916 = vand.u32 %v56, 4294901760
    %917 = vmatpush2.msra.mxu0 %v916
    %918 = vmatprep.subr.mxu0 0.0
    %v919 = vand.u32 %v55, 4294901760
    %920 = vmatpush2.msra.mxu0 %v919
    %921 = vmatprep.subr.mxu0 0.0
    %v922 = vand.u32 %v54, 4294901760
    %923 = vmatpush2.msra.mxu0 %v922
    %v924 = vand.u32 %v37, 4294901760
    %925 = vmatprep.mubr.f32.mxu0 %v924
    %v926 = vand.u32 %v36, 4294901760
    %927 = vmatmul.mubr.f32.gmra.mxu0 %v926
    %v928 = vpop.f32.mrf.mxu0
    %v929 = vadd.f32 %v825, %v928
    %v930 = vpop.f32.mrf.mxu0
    %931 = vdwg.mxu0
    %v932 = vmax.f32 %v929, 1.1754944e-38
    %v933 = vlog2.pop %v932
    %v934 = vmul.f32 %v933, 0.6931472
    %v935 = vmul.f32 %v934, 0.15384616
    %v936 = vmul.f32 %v935, 1.442695
    %v937 = vpow.pop %v936
    %vm938 = vcmask 523264
    %939 = vst.msk [vmem:[#allocation2] sm:$0xff] %vm938, %v937
    // Predicated region
    $region10: #{tpu_custom_call.1} parent=1 // pred_check
      _
    $region11: #{tpu_custom_call.1} parent=1 // pred_check_branch
      %941 = sbr.rel (0) target = $region13
    $region12: #{tpu_custom_call.1} parent=1 // pred_region
      %s943 = ssub.s32 128, 128
      %944 = vsyncadd [#allocation3], %s943
      %s946 = sshll.u32 [#allocation2], 4
      %s947 = int_to_ptr.vmem [resolvable:$true] %s946
      %949 = dma.vmem_to_hbm [thread:$0]  %s947, 128, %s2, [#allocation3]
    $region13: #{tpu_custom_call.1} parent=1 // pred_fallthru
      _
    // Predicated region
    $region14: #{tpu_custom_call.1} parent=1 // pred_check
      _
    $region15: #{tpu_custom_call.1} parent=1 // pred_check_branch
      %951 = sbr.rel (0) target = $region17
    $region16: #{tpu_custom_call.1} parent=1 // pred_region
      %952 = dma.done [#allocation3], 128
    $region17: #{tpu_custom_call.1} parent=1 // pred_fallthru
      _
    %953 = vsyncpa [#allocation3], 1

</llo_original>
